<compile_context>
chip_gen: v7x
topology: tpu7x:2x2x1
jax: 0.10.0
libtpu: 0.0.40
codegen_flags: <defaults>
</compile_context>

<pallas_src>
import jax
import jax.numpy as jnp
from jax.experimental import pallas as pl
from jax.experimental.pallas import tpu as pltpu

CONFIG = {"compressed_dim": 16, "eplhb_hidden_dim": 32}

_LANES = 128
_ROW_GRANULE = 16  # row-tile granule (safe for both f32 and bf16 z)


def _cdiv(a, b):
    return -(-a // b)


def _round_up(x, m):
    return _cdiv(x, m) * m


def eplhb_kernel(x_ref, w1_ref, b1_ref, w2_ref, b2_ref, o_ref):
    """Fused 2-layer MLP on a row tile of packed samples.

    x_ref : (TG, 128) VMEM  -- 8 samples packed per lane-dense row (z dtype)
    w1_ref: (128, 256) VMEM -- block-diagonal replicated W1^T (bf16, resident)
    b1_ref: (1, 256)   VMEM -- tiled b1 (f32, resident)
    w2_ref: (256, 8)   VMEM -- block-diagonal replicated w2^T (bf16, resident)
    b2_ref: (1,)       SMEM -- scalar bias of the second Linear
    o_ref : (TG, 8)    VMEM -- one output per packed sample (f32)
    """
    # Cast the tile on the VALU (idle in this HBM-bound kernel); HBM read stays in
    # the source dtype, MXU runs on the fast bf16 path, accumulation is f32.
    x = x_ref[...].astype(w1_ref.dtype)
    h = jnp.dot(x, w1_ref[...], preferred_element_type=jnp.float32) + b1_ref[...]
    h = jnp.maximum(h, 0.0).astype(w2_ref.dtype)  # bf16 hidden halves its VMEM traffic
    out = jnp.dot(h, w2_ref[...], preferred_element_type=jnp.float32) + b2_ref[0]
    o_ref[...] = out.astype(o_ref.dtype)


def _expand_block_diag_params(w1, b1, w2, b2, reps, compute_dtype):
    """Replicate the tiny MLP weights block-diagonally so `reps` samples share a row."""
    H, D = w1.shape
    eye = jnp.eye(reps, dtype=jnp.float32)
    w1t = w1.astype(jnp.float32).T                                      # (D, H)
    w1bd = jnp.einsum("rs,dh->rdsh", eye, w1t).reshape(reps * D, reps * H)
    b1t = jnp.tile(b1.astype(jnp.float32).reshape(1, H), (1, reps))     # (1, reps*H)
    w2c = w2.astype(jnp.float32).reshape(H, 1)                          # (H, 1)
    w2bd = jnp.einsum("rs,ho->rhso", eye, w2c).reshape(reps * H, reps)  # (reps*H, reps)
    b2s = jnp.asarray(b2, jnp.float32).reshape(1)
    return w1bd.astype(compute_dtype), b1t, w2bd.astype(compute_dtype), b2s


def _select_tile_rows(n_rows, target_rows):
    """Row-tile size: large enough to amortize per-grid-step overhead, >= 2 grid steps
    whenever possible (v7x dual-TC sharding), multiple of the sublane granule; ragged
    tails are left to Pallas' partial-block masking (no z padding)."""
    if n_rows <= 2 * _ROW_GRANULE:
        return n_rows                                   # single block == full dim
    n_steps = max(2, _cdiv(n_rows, target_rows))
    tile = _round_up(_cdiv(n_rows, n_steps), _ROW_GRANULE)
    return min(tile, n_rows)


def eplhb_forward(z, w1, b1, w2, b2, *, target_tile_rows=4096,
                  compute_dtype=jnp.bfloat16):
    """z: (B, D) -> (B,) float32 (0-d scalar when B == 1), matching PyTorch `.squeeze()`.

    w1: (H, D), b1: (H,), w2: (1, H), b2: (1,) -- PyTorch nn.Linear parameter layout.
    z may be float32 or bfloat16; matmuls accumulate in float32 either way.
    """
    B, D = z.shape
    H = w1.shape[0]
    assert _LANES % D == 0, "compressed_dim must divide 128"
    reps = _LANES // D                       # samples packed per lane-dense row (8 for D=16)

    # Zero-copy view: (B, D) row-major -> (G, 128). Only a ragged batch (B % reps != 0)
    # needs a small pad/copy; typical batches (e.g. 64) reshape for free.
    G = _cdiv(B, reps)
    if G * reps != B:
        z = jnp.pad(z, ((0, G * reps - B), (0, 0)))
    x = z.reshape(G, _LANES)

    w1bd, b1t, w2bd, b2s = _expand_block_diag_params(w1, b1, w2, b2, reps, compute_dtype)

    tile_rows = _select_tile_rows(G, target_tile_rows)
    grid = (_cdiv(G, tile_rows),)            # ragged last block handled by Pallas masking

    out = pl.pallas_call(
        eplhb_kernel,
        out_shape=jax.ShapeDtypeStruct((G, reps), jnp.float32),
        grid_spec=pltpu.PrefetchScalarGridSpec(
            num_scalar_prefetch=0,
            grid=grid,
            in_specs=[
                pl.BlockSpec((tile_rows, _LANES), lambda i: (i, 0)),    # z tile (lane-dense rows)
                pl.BlockSpec((reps * D, reps * H), lambda i: (0, 0)),   # W1 block-diag (resident)
                pl.BlockSpec((1, reps * H), lambda i: (0, 0)),          # b1 tiled (resident)
                pl.BlockSpec((reps * H, reps), lambda i: (0, 0)),       # W2 block-diag (resident)
                pl.BlockSpec(memory_space=pltpu.MemorySpace.SMEM),      # b2 scalar (no VMEM buffer)
            ],
            out_specs=pl.BlockSpec((tile_rows, reps), lambda i: (i, 0)),
        ),
        compiler_params=pltpu.CompilerParams(
            dimension_semantics=("parallel",),            # shard batch tiles across TCs on v7x
            vmem_limit_bytes=40 * 1024 * 1024,            # ~11 MiB needed at the default tile
        ),
    )(x, w1bd, b1t, w2bd, b2s)

    out = out.reshape(G * reps)[:B]           # free reshape back to per-sample order
    if B == 1:
        out = out[0]                          # PyTorch .squeeze(): 0-d scalar for a single row
    return out


def init_params(key, compressed_dim, hidden_dim):
    """PyTorch-default-style init in nn.Linear's native (out_features, in_features) layout."""
    k1, k2, k3, k4 = jax.random.split(key, 4)
    bound1 = 1.0 / jnp.sqrt(compressed_dim)
    bound2 = 1.0 / jnp.sqrt(hidden_dim)
    w1 = jax.random.uniform(k1, (hidden_dim, compressed_dim), jnp.float32, -bound1, bound1)
    b1 = jax.random.uniform(k2, (hidden_dim,), jnp.float32, -bound1, bound1)
    w2 = jax.random.uniform(k3, (1, hidden_dim), jnp.float32, -bound2, bound2)
    b2 = jax.random.uniform(k4, (1,), jnp.float32, -bound2, bound2)
    return w1, b1, w2, b2


def _reference(z, w1, b1, w2, b2):
    h = jnp.maximum(z.astype(jnp.float32) @ w1.T + b1.reshape(1, -1), 0.0)
    out = h @ w2.T + b2.reshape(1, 1)
    return jnp.squeeze(out)


if __name__ == "__main__":
    key = jax.random.PRNGKey(0)
    k_z, k_p = jax.random.split(key)

    D = CONFIG["compressed_dim"]
    H = CONFIG["eplhb_hidden_dim"]
    w1, b1, w2, b2 = init_params(k_p, D, H)

    # Cases: config batch size, the B==1 squeeze path, a ragged batch (B % 8 != 0),
    # and a batch large enough for a multi-step grid with a partial last block.
    for B in (64, 1, 13, 1000):
        z = jax.random.normal(jax.random.fold_in(k_z, B), (B, D), dtype=jnp.float32)
        out = jax.block_until_ready(eplhb_forward(z, w1, b1, w2, b2))
        ref = _reference(z, w1, b1, w2, b2)
        expected_shape = () if B == 1 else (B,)
        assert out.shape == expected_shape, (B, out.shape)
        # bf16 MXU path (f32 accumulation) vs. f32 reference -> loosened tolerance.
        assert jnp.allclose(out, ref, atol=2e-2, rtol=2e-2), (
            B, float(jnp.max(jnp.abs(out - ref))))

    print("KERNEL_OK")
</pallas_src>

<mosaic_0001>
module attributes {stable_mosaic.version = 11 : i64} {
  func.func @eplhb_kernel(%arg0: i32, %arg1: memref<8x128xf32, #tpu.memory_space<vmem>>, %arg2: memref<128x256xbf16, #tpu.memory_space<vmem>>, %arg3: memref<1x256xf32, #tpu.memory_space<vmem>>, %arg4: memref<256x8xbf16, #tpu.memory_space<vmem>>, %arg5: memref<1xf32, #tpu.memory_space<smem>>, %arg6: memref<8x8xf32, #tpu.memory_space<vmem>>) attributes {dimension_semantics = [#tpu.dimension_semantics<parallel>], iteration_bounds = array<i64: 1>, scalar_prefetch = 0 : i64, scratch_operands = 0 : i64, tpu.core_type = #tpu.core_type<tc>, window_params = [{transform_indices = @transform_0, window_bounds = array<i64: 8, 128>}, {pipeline_mode = #tpu.pipeline_mode<synchronous>, transform_indices = @transform_1, window_bounds = array<i64: 128, 256>}, {pipeline_mode = #tpu.pipeline_mode<synchronous>, transform_indices = @transform_2, window_bounds = array<i64: 1, 256>}, {pipeline_mode = #tpu.pipeline_mode<synchronous>, transform_indices = @transform_3, window_bounds = array<i64: 256, 8>}, {transform_indices = @transform_4, window_bounds = array<i64: 1>}, {transform_indices = @transform_5, window_bounds = array<i64: 8, 8>}]} {
    %c0 = arith.constant 0 : index
    %c0_0 = arith.constant 0 : index
    %0 = vector.load %arg1[%c0, %c0_0] : memref<8x128xf32, #tpu.memory_space<vmem>>, vector<8x128xf32>
    %1 = arith.truncf %0 : vector<8x128xf32> to vector<8x128xbf16>
    %c0_1 = arith.constant 0 : index
    %c0_2 = arith.constant 0 : index
    %2 = vector.load %arg2[%c0_1, %c0_2] : memref<128x256xbf16, #tpu.memory_space<vmem>>, vector<128x256xbf16>
    %cst = arith.constant dense<0.000000e+00> : vector<8x256xf32>
    %3 = tpu.matmul %1, %2, %cst {dimension_numbers = #tpu.dot_dimension_numbers<[1], [0], [0], [1], [0, 0, 1, 1], [], []>} : vector<8x128xbf16>, vector<128x256xbf16>, vector<8x256xf32> -> vector<8x256xf32>
    %c0_3 = arith.constant 0 : index
    %c0_4 = arith.constant 0 : index
    %4 = vector.load %arg3[%c0_3, %c0_4] : memref<1x256xf32, #tpu.memory_space<vmem>>, vector<1x256xf32>
    %5 = vector.broadcast %4 : vector<1x256xf32> to vector<8x256xf32>
    %6 = arith.addf %3, %5 : vector<8x256xf32>
    %cst_5 = arith.constant 0.000000e+00 : f32
    %7 = vector.broadcast %cst_5 : f32 to vector<8x256xf32>
    %8 = arith.maximumf %6, %7 : vector<8x256xf32>
    %9 = arith.truncf %8 : vector<8x256xf32> to vector<8x256xbf16>
    %c0_6 = arith.constant 0 : index
    %c0_7 = arith.constant 0 : index
    %10 = vector.load %arg4[%c0_6, %c0_7] : memref<256x8xbf16, #tpu.memory_space<vmem>>, vector<256x8xbf16>
    %cst_8 = arith.constant dense<0.000000e+00> : vector<8x8xf32>
    %11 = tpu.matmul %9, %10, %cst_8 {dimension_numbers = #tpu.dot_dimension_numbers<[1], [0], [0], [1], [0, 0, 1, 1], [], []>} : vector<8x256xbf16>, vector<256x8xbf16>, vector<8x8xf32> -> vector<8x8xf32>
    %c0_9 = arith.constant 0 : index
    %12 = memref.load %arg5[%c0_9] : memref<1xf32, #tpu.memory_space<smem>>
    %13 = vector.broadcast %12 : f32 to vector<8x8xf32>
    %14 = arith.addf %11, %13 : vector<8x8xf32>
    %c0_10 = arith.constant 0 : index
    %c0_11 = arith.constant 0 : index
    %15 = vector.load %arg6[%c0_10, %c0_11] : memref<8x8xf32, #tpu.memory_space<vmem>>, vector<8x8xf32>
    tpu.vector_store %arg6[%c0_10, %c0_11], %14 {strides = array<i32>} : memref<8x8xf32, #tpu.memory_space<vmem>>, vector<8x8xf32>,
    return
  }
  func.func @transform_0(%arg0: i32) -> (i32, i32) {
    %c0_i32 = arith.constant 0 : i32
    %c0_i32_0 = arith.constant 0 : i32
    return %arg0, %c0_i32 : i32, i32
  }
  func.func @transform_1(%arg0: i32) -> (i32, i32) {
    %c0_i32 = arith.constant 0 : i32
    %c0_i32_0 = arith.constant 0 : i32
    %c0_i32_1 = arith.constant 0 : i32
    return %c0_i32, %c0_i32_0 : i32, i32
  }
  func.func @transform_2(%arg0: i32) -> (i32, i32) {
    %c0_i32 = arith.constant 0 : i32
    %c0_i32_0 = arith.constant 0 : i32
    %c0_i32_1 = arith.constant 0 : i32
    return %c0_i32, %c0_i32_0 : i32, i32
  }
  func.func @transform_3(%arg0: i32) -> (i32, i32) {
    %c0_i32 = arith.constant 0 : i32
    %c0_i32_0 = arith.constant 0 : i32
    %c0_i32_1 = arith.constant 0 : i32
    return %c0_i32, %c0_i32_0 : i32, i32
  }
  func.func @transform_4(%arg0: i32) -> i32 {
    %c0_i32 = arith.constant 0 : i32
    %c0_i32_0 = arith.constant 0 : i32
    return %c0_i32 : i32
  }
  func.func @transform_5(%arg0: i32) -> (i32, i32) {
    %c0_i32 = arith.constant 0 : i32
    %c0_i32_0 = arith.constant 0 : i32
    return %arg0, %c0_i32 : i32, i32
  }
}

</mosaic_0001>

<llo_original>
// kernel: tpu_custom_call.1
$region0: #{tpu_custom_call.1}
  #allocation0 [shape = 'u32[]', space=smem, size = 0x4, offset = 0x4, fixed_abs, tag = 'smem constant byte address 0x4 - core index']
  #allocation1 [shape = 'u32[144,128]{1,0:T(1,128)}', space=vmem, size = 0x12000, scoped, tag = 'internal scratch']
  #allocation2 [shape = 'f32[1]{0:T(128)S(6)}', space=smem, size = 0x200, scoped, tag = 'scoped memory for tpu_custom_call.1']
  %s0 = inlined_call_operand.vmem [shape: f32[8,128], index: 0, kind: input, shape index: {}]
  %s1 = inlined_call_operand.vmem [shape: bf16[128,256], index: 1, kind: input, shape index: {}]
  %s2 = inlined_call_operand.vmem [shape: f32[1,256], index: 2, kind: input, shape index: {}]
  %s3 = inlined_call_operand.vmem [shape: bf16[256,8], index: 3, kind: input, shape index: {}]
  %s4 = inlined_call_operand.<no memory space> [shape: f32[1], index: 4, kind: input, shape index: {}]
  %s5 = inlined_call_operand.hbm [shape: f32[8,8], index: 5, kind: output, shape index: {}]
  %s6 = sld [smem:[#allocation0]]
  $region30: #{tpu_custom_call.1} parent=0
    _
  %s8 = ssub.s32 1, %s6
  %s9 = scalar_select 0, %s8, %s6
  %10 = sst [smem:[#allocation2]] %s4
  $region1: #{tpu_custom_call.1} parent=0
    #allocation3 [shape = 'u8[4096]{0}', space=vmem, size = 0x1000, scoped, tag = 'output window, operand 0, single buffered']
    #allocation4 [shape = 's32[1]{0}', space=sflag, size = 0x4, scoped, tag = 'scoped memory for tpu_custom_call.1']
    %11 = vsyncpa [#allocation4], 0
    // Predicated region
    $region2: #{tpu_custom_call.1} parent=1 // pred_check
      _
    $region3: #{tpu_custom_call.1} parent=1 // pred_check_branch
      %13 = sbr.rel (0) target = $region5
    $region4: #{tpu_custom_call.1} parent=1 // pred_region
      _
    $region5: #{tpu_custom_call.1} parent=1 // pred_fallthru
      _
    // Predicated region
    $region6: #{tpu_custom_call.1} parent=1 // pred_check
      _
    $region7: #{tpu_custom_call.1} parent=1 // pred_check_branch
      %15 = sbr.rel (0) target = $region9
    $region8: #{tpu_custom_call.1} parent=1 // pred_region
      _
    $region9: #{tpu_custom_call.1} parent=1 // pred_fallthru
      _
    // Predicated region
    $region10: #{tpu_custom_call.1} parent=1 // pred_check
      _
    $region11: #{tpu_custom_call.1} parent=1 // pred_check_branch
      %17 = sbr.rel (0) target = $region13
    $region12: #{tpu_custom_call.1} parent=1 // pred_region
      _
    $region13: #{tpu_custom_call.1} parent=1 // pred_fallthru
      _
    // Predicated region
    $region14: #{tpu_custom_call.1} parent=1 // pred_check
      _
    $region15: #{tpu_custom_call.1} parent=1 // pred_check_branch
      %19 = sbr.rel (0) target = $region17
    $region16: #{tpu_custom_call.1} parent=1 // pred_region
      _
    $region17: #{tpu_custom_call.1} parent=1 // pred_fallthru
      _
    // Predicated region
    $region18: #{tpu_custom_call.1} parent=1 // pred_check
      _
    $region19: #{tpu_custom_call.1} parent=1 // pred_check_branch
      %21 = sbr.rel (0) target = $region21
    $region20: #{tpu_custom_call.1} parent=1 // pred_region
      _
    $region21: #{tpu_custom_call.1} parent=1 // pred_fallthru
      _
    %v23 = vld [vmem:[%s0] sm:$0xff]
    %v24 = vpack.c.bf16 %v23, %v23
    %v25 = vld [vmem:[%s1] sm:$0xff]
    %v26 = vld [vmem:[%s1 + $0x8] sm:$0xff]
    %v27 = vld [vmem:[%s1 + $0x10] sm:$0xff]
    %v28 = vld [vmem:[%s1 + $0x18] sm:$0xff]
    %v29 = vld [vmem:[%s1 + $0x20] sm:$0xff]
    %v30 = vld [vmem:[%s1 + $0x28] sm:$0xff]
    %v31 = vld [vmem:[%s1 + $0x30] sm:$0xff]
    %v32 = vld [vmem:[%s1 + $0x38] sm:$0xff]
    %v33 = vld [vmem:[%s1 + $0x40] sm:$0xff]
    %v34 = vld [vmem:[%s1 + $0x48] sm:$0xff]
    %v35 = vld [vmem:[%s1 + $0x50] sm:$0xff]
    %v36 = vld [vmem:[%s1 + $0x58] sm:$0xff]
    %v37 = vld [vmem:[%s1 + $0x60] sm:$0xff]
    %v38 = vld [vmem:[%s1 + $0x68] sm:$0xff]
    %v39 = vld [vmem:[%s1 + $0x70] sm:$0xff]
    %v40 = vld [vmem:[%s1 + $0x78] sm:$0xff]
    %v41 = vld [vmem:[%s2] sm:$0x3]
    %v43 = vlaneseq
    %v44 = vshrl.u32 %v43, 7
    %v45 = vsub.s32 0, %v44
    %v46 = vrot.slane %v41, %v45
    %v47 = vlaneseq
    %v48 = vshrl.u32 %v47, 7
    %v49 = vsub.s32 1, %v48
    %v50 = vrot.slane %v41, %v49
    %v69 = vunpack.c.l.b16 %v25
    %v70 = vunpack.c.h.b16 %v25
    %v71 = vunpack.c.l.b16 %v26
    %v72 = vunpack.c.h.b16 %v26
    %v73 = vunpack.c.l.b16 %v27
    %v74 = vunpack.c.h.b16 %v27
    %v75 = vunpack.c.l.b16 %v28
    %v76 = vunpack.c.h.b16 %v28
    %v77 = vunpack.c.l.b16 %v29
    %v78 = vunpack.c.h.b16 %v29
    %v79 = vunpack.c.l.b16 %v30
    %v80 = vunpack.c.h.b16 %v30
    %v81 = vunpack.c.l.b16 %v31
    %v82 = vunpack.c.h.b16 %v31
    %v83 = vunpack.c.l.b16 %v32
    %v84 = vunpack.c.h.b16 %v32
    %v85 = vunpack.c.l.b16 %v33
    %v86 = vunpack.c.h.b16 %v33
    %v87 = vunpack.c.l.b16 %v34
    %v88 = vunpack.c.h.b16 %v34
    %v89 = vunpack.c.l.b16 %v35
    %v90 = vunpack.c.h.b16 %v35
    %v91 = vunpack.c.l.b16 %v36
    %v92 = vunpack.c.h.b16 %v36
    %v93 = vunpack.c.l.b16 %v37
    %v94 = vunpack.c.h.b16 %v37
    %v95 = vunpack.c.l.b16 %v38
    %v96 = vunpack.c.h.b16 %v38
    %v97 = vunpack.c.l.b16 %v39
    %v98 = vunpack.c.h.b16 %v39
    %v99 = vunpack.c.l.b16 %v40
    %v100 = vunpack.c.h.b16 %v40
    %v101 = vpack.c.b16 %v71, %v69
    %v102 = vpack.c.b16 %v72, %v70
    %v103 = vpack.c.b16 %v75, %v73
    %v104 = vpack.c.b16 %v76, %v74
    %v105 = vpack.c.b16 %v79, %v77
    %v106 = vpack.c.b16 %v80, %v78
    %v107 = vpack.c.b16 %v83, %v81
    %v108 = vpack.c.b16 %v84, %v82
    %v109 = vpack.c.b16 %v87, %v85
    %v110 = vpack.c.b16 %v88, %v86
    %v111 = vpack.c.b16 %v91, %v89
    %v112 = vpack.c.b16 %v92, %v90
    %v113 = vpack.c.b16 %v95, %v93
    %v114 = vpack.c.b16 %v96, %v94
    %v115 = vpack.c.b16 %v99, %v97
    %v116 = vpack.c.b16 %v100, %v98
    %133 = vmatprep.subr.bf16.mxu0 %v102
    %134 = vmatpush1.bf16.msra.mxu0 %v101
    %135 = vmatprep.subr.bf16.mxu0 %v104
    %136 = vmatpush1.bf16.msra.mxu0 %v103
    %137 = vmatprep.subr.bf16.mxu0 %v106
    %138 = vmatpush1.bf16.msra.mxu0 %v105
    %139 = vmatprep.subr.bf16.mxu0 %v108
    %140 = vmatpush1.bf16.msra.mxu0 %v107
    %141 = vmatprep.subr.bf16.mxu0 %v110
    %142 = vmatpush1.bf16.msra.mxu0 %v109
    %143 = vmatprep.subr.bf16.mxu0 %v112
    %144 = vmatpush1.bf16.msra.mxu0 %v111
    %145 = vmatprep.subr.bf16.mxu0 %v114
    %146 = vmatpush1.bf16.msra.mxu0 %v113
    %147 = vmatprep.subr.bf16.mxu0 %v116
    %148 = vmatpush1.bf16.msra.mxu0 %v115
    %149 = vmatprep.subr.bf16.mxu0 0
    %150 = vmatpush1.bf16.msra.mxu0 0
    %151 = vmatprep.subr.bf16.mxu0 0
    %152 = vmatpush1.bf16.msra.mxu0 0
    %153 = vmatprep.subr.bf16.mxu0 0
    %154 = vmatpush1.bf16.msra.mxu0 0
    %155 = vmatprep.subr.bf16.mxu0 0
    %156 = vmatpush1.bf16.msra.mxu0 0
    %157 = vmatprep.subr.bf16.mxu0 0
    %158 = vmatpush1.bf16.msra.mxu0 0
    %159 = vmatprep.subr.bf16.mxu0 0
    %160 = vmatpush1.bf16.msra.mxu0 0
    %161 = vmatprep.subr.bf16.mxu0 0
    %162 = vmatpush1.bf16.msra.mxu0 0
    %163 = vmatprep.subr.bf16.mxu0 0
    %164 = vmatpush1.bf16.msra.mxu0 0
    %165 = vmatprep.mubr.bf16.mxu0 0
    %166 = vmatmul.mubr.bf16.gmra.mrb[0].mxu0 %v24
    %v167 = vpop.f32.mrb[0].mxu0
    %v168 = vadd.f32 %v46, %v167
    %v169 = vpop.f32.mrb[0].mxu0
    %v170 = vadd.f32 %v50, %v169
    %v171 = vpop.f32.mrb[0].mxu0
    %v172 = vpop.f32.mrb[0].mxu0
    %173 = vdwg.mxu0
    %v174 = vmax.f32 %v168, 0.0
    %v175 = vmax.f32 %v170, 0.0
    %v176 = vpack.c.bf16 %v174, %v174
    %v177 = vpack.c.bf16 %v175, %v175
    %v178 = vld [vmem:[%s3] sm:$0xf]
    %v179 = vld [vmem:[%s3 + $0x4] sm:$0xf]
    %v180 = vld [vmem:[%s3 + $0x8] sm:$0xf]
    %v181 = vld [vmem:[%s3 + $0xc] sm:$0xf]
    %v182 = vld [vmem:[%s3 + $0x10] sm:$0xf]
    %v183 = vld [vmem:[%s3 + $0x14] sm:$0xf]
    %v184 = vld [vmem:[%s3 + $0x18] sm:$0xf]
    %v185 = vld [vmem:[%s3 + $0x1c] sm:$0xf]
    %v186 = vld [vmem:[%s3 + $0x20] sm:$0xf]
    %v187 = vld [vmem:[%s3 + $0x24] sm:$0xf]
    %v188 = vld [vmem:[%s3 + $0x28] sm:$0xf]
    %v189 = vld [vmem:[%s3 + $0x2c] sm:$0xf]
    %v190 = vld [vmem:[%s3 + $0x30] sm:$0xf]
    %v191 = vld [vmem:[%s3 + $0x34] sm:$0xf]
    %v192 = vld [vmem:[%s3 + $0x38] sm:$0xf]
    %v193 = vld [vmem:[%s3 + $0x3c] sm:$0xf]
    %v194 = vld [vmem:[%s3 + $0x40] sm:$0xf]
    %v195 = vld [vmem:[%s3 + $0x44] sm:$0xf]
    %v196 = vld [vmem:[%s3 + $0x48] sm:$0xf]
    %v197 = vld [vmem:[%s3 + $0x4c] sm:$0xf]
    %v198 = vld [vmem:[%s3 + $0x50] sm:$0xf]
    %v199 = vld [vmem:[%s3 + $0x54] sm:$0xf]
    %v200 = vld [vmem:[%s3 + $0x58] sm:$0xf]
    %v201 = vld [vmem:[%s3 + $0x5c] sm:$0xf]
    %v202 = vld [vmem:[%s3 + $0x60] sm:$0xf]
    %v203 = vld [vmem:[%s3 + $0x64] sm:$0xf]
    %v204 = vld [vmem:[%s3 + $0x68] sm:$0xf]
    %v205 = vld [vmem:[%s3 + $0x6c] sm:$0xf]
    %v206 = vld [vmem:[%s3 + $0x70] sm:$0xf]
    %v207 = vld [vmem:[%s3 + $0x74] sm:$0xf]
    %v208 = vld [vmem:[%s3 + $0x78] sm:$0xf]
    %v209 = vld [vmem:[%s3 + $0x7c] sm:$0xf]
    %s210 = sld [smem:[#allocation2]]
    %v211 = vstv %s210
    %v244 = vunpack.c.l.b16 %v178
    %v245 = vunpack.c.l.b16 %v179
    %v246 = vunpack.c.l.b16 %v180
    %v247 = vunpack.c.l.b16 %v181
    %v248 = vunpack.c.l.b16 %v182
    %v249 = vunpack.c.l.b16 %v183
    %v250 = vunpack.c.l.b16 %v184
    %v251 = vunpack.c.l.b16 %v185
    %v252 = vunpack.c.l.b16 %v186
    %v253 = vunpack.c.l.b16 %v187
    %v254 = vunpack.c.l.b16 %v188
    %v255 = vunpack.c.l.b16 %v189
    %v256 = vunpack.c.l.b16 %v190
    %v257 = vunpack.c.l.b16 %v191
    %v258 = vunpack.c.l.b16 %v192
    %v259 = vunpack.c.l.b16 %v193
    %v260 = vunpack.c.l.b16 %v194
    %v261 = vunpack.c.l.b16 %v195
    %v262 = vunpack.c.l.b16 %v196
    %v263 = vunpack.c.l.b16 %v197
    %v264 = vunpack.c.l.b16 %v198
    %v265 = vunpack.c.l.b16 %v199
    %v266 = vunpack.c.l.b16 %v200
    %v267 = vunpack.c.l.b16 %v201
    %v268 = vunpack.c.l.b16 %v202
    %v269 = vunpack.c.l.b16 %v203
    %v270 = vunpack.c.l.b16 %v204
    %v271 = vunpack.c.l.b16 %v205
    %v272 = vunpack.c.l.b16 %v206
    %v273 = vunpack.c.l.b16 %v207
    %v274 = vunpack.c.l.b16 %v208
    %v275 = vunpack.c.l.b16 %v209
    %v276 = vpack.c.b16 %v245, %v244
    %v277 = vpack.c.b16 %v247, %v246
    %v278 = vpack.c.b16 %v249, %v248
    %v279 = vpack.c.b16 %v251, %v250
    %v280 = vpack.c.b16 %v253, %v252
    %v281 = vpack.c.b16 %v255, %v254
    %v282 = vpack.c.b16 %v257, %v256
    %v283 = vpack.c.b16 %v259, %v258
    %v284 = vpack.c.b16 %v261, %v260
    %v285 = vpack.c.b16 %v263, %v262
    %v286 = vpack.c.b16 %v265, %v264
    %v287 = vpack.c.b16 %v267, %v266
    %v288 = vpack.c.b16 %v269, %v268
    %v289 = vpack.c.b16 %v271, %v270
    %v290 = vpack.c.b16 %v273, %v272
    %v291 = vpack.c.b16 %v275, %v274
    %308 = vmatprep.subr.bf16.mxu0 0
    %309 = vmatpush1.bf16.msra.mxu0 %v276
    %310 = vmatprep.subr.bf16.mxu0 0
    %311 = vmatpush1.bf16.msra.mxu0 %v277
    %312 = vmatprep.subr.bf16.mxu0 0
    %313 = vmatpush1.bf16.msra.mxu0 %v278
    %314 = vmatprep.subr.bf16.mxu0 0
    %315 = vmatpush1.bf16.msra.mxu0 %v279
    %316 = vmatprep.subr.bf16.mxu0 0
    %317 = vmatpush1.bf16.msra.mxu0 %v280
    %318 = vmatprep.subr.bf16.mxu0 0
    %319 = vmatpush1.bf16.msra.mxu0 %v281
    %320 = vmatprep.subr.bf16.mxu0 0
    %321 = vmatpush1.bf16.msra.mxu0 %v282
    %322 = vmatprep.subr.bf16.mxu0 0
    %323 = vmatpush1.bf16.msra.mxu0 %v283
    %324 = vmatprep.subr.bf16.mxu0 0
    %325 = vmatpush1.bf16.msra.mxu0 %v284
    %326 = vmatprep.subr.bf16.mxu0 0
    %327 = vmatpush1.bf16.msra.mxu0 %v285
    %328 = vmatprep.subr.bf16.mxu0 0
    %329 = vmatpush1.bf16.msra.mxu0 %v286
    %330 = vmatprep.subr.bf16.mxu0 0
    %331 = vmatpush1.bf16.msra.mxu0 %v287
    %332 = vmatprep.subr.bf16.mxu0 0
    %333 = vmatpush1.bf16.msra.mxu0 %v288
    %334 = vmatprep.subr.bf16.mxu0 0
    %335 = vmatpush1.bf16.msra.mxu0 %v289
    %336 = vmatprep.subr.bf16.mxu0 0
    %337 = vmatpush1.bf16.msra.mxu0 %v290
    %338 = vmatprep.subr.bf16.mxu0 0
    %339 = vmatpush1.bf16.msra.mxu0 %v291
    %340 = vmatprep.mubr.bf16.mxu0 %v177
    %341 = vmatmul.mubr.bf16.gmra.mrb[0].mxu0 %v176
    %v342 = vpop.f32.mrb[0].mxu0
    %v343 = vadd.f32 %v211, %v342
    %v344 = vpop.f32.mrb[0].mxu0
    %v345 = vpop.f32.mrb[0].mxu0
    %v346 = vpop.f32.mrb[0].mxu0
    %347 = vdwg.mxu0
    %vm348 = vcmask 64512
    %349 = vst.msk [vmem:[#allocation3] sm:$0xff] %vm348, %v343
    // Predicated region
    $region22: #{tpu_custom_call.1} parent=1 // pred_check
      _
    $region23: #{tpu_custom_call.1} parent=1 // pred_check_branch
      %351 = sbr.rel (0) target = $region25
    $region24: #{tpu_custom_call.1} parent=1 // pred_region
      %s353 = ssub.s32 128, 128
      %354 = vsyncadd [#allocation4], %s353
      %s356 = sshll.u32 [#allocation3], 4
      %s357 = int_to_ptr.vmem [resolvable:$true] %s356
      %359 = dma.vmem_to_hbm [thread:$0]  %s357, 128, %s5, [#allocation4]
    $region25: #{tpu_custom_call.1} parent=1 // pred_fallthru
      _
    // Predicated region
    $region26: #{tpu_custom_call.1} parent=1 // pred_check
      _
    $region27: #{tpu_custom_call.1} parent=1 // pred_check_branch
      %361 = sbr.rel (0) target = $region29
    $region28: #{tpu_custom_call.1} parent=1 // pred_region
      %362 = dma.done [#allocation4], 128
    $region29: #{tpu_custom_call.1} parent=1 // pred_fallthru
      _
    %363 = vsyncpa [#allocation4], 1

</llo_original>
